<compile_context>
chip_gen: v7x
topology: tpu7x:2x2x1
jax: 0.10.0
libtpu: 0.0.40
codegen_flags: <defaults>
</compile_context>

<pallas_src>
import functools

import numpy as np
import jax
import jax.numpy as jnp
from jax.experimental import pallas as pl
from jax.experimental.pallas import tpu as pltpu


def _round_up(n, m):
    return ((n + m - 1) // m) * m


def _cdiv(a, b):
    return (a + b - 1) // b


def _drop_path_kernel(x_ref, s_ref, o_ref):
    # x_ref: (tr, C) tile, s_ref: (tr, 1) per-row keep/scale factor.
    # Pure elementwise VPU multiply with a lane-broadcast of the scale.
    o_ref[...] = x_ref[...] * s_ref[...]


def _plan_layout(B, F, itemsize):
    """Pick a sublane/lane-dense (rows, C) layout and a row tile for it.

    Returns (C, Fp, rows_per_sample, R, Rp, tr, steps):
      C     lane width (multiple of 128)
      Fp    per-sample feature count after padding F up to a multiple of C
      R     real rows (= B * Fp // C); Rp rows after padding to a multiple of tr
      tr    rows per grid step (multiple of the sublane packing granularity)
      steps Rp // tr grid steps
    """
    # Lane width: a wide multiple of 128 so stores are unmasked full-width vst.
    if F <= 2048:
        C = _round_up(max(F, 1), 128)
    else:
        C = 512                      # <= 511 pad elems per sample, negligible
        for cand in (2048, 1024, 512):
            if F % cand == 0:        # prefer an exact divisor: zero feature pad
                C = cand
                break
    Fp = _round_up(F, C)
    rows_per_sample = Fp // C
    R = B * rows_per_sample

    # Sublane packing granularity: (8,128) f32, (16,128) bf16, (32,128) int8.
    sub = {4: 8, 2: 16, 1: 32}.get(itemsize, 8)
    R_pad = _round_up(R, sub)

    # Pure HBM streaming: want >= 4 steps so the pipeline overlaps DMA in/out
    # with the multiply, an even step count so v7x's two TensorCores split the
    # "parallel" axis evenly, and ~2 MiB blocks (~8 MiB double-buffered
    # footprint) that fit the scoped-VMEM default on v5e/v6e/v7x.
    target_block_bytes = 2 * 1024 * 1024
    total_bytes = R_pad * C * itemsize
    max_steps = max(1, R_pad // sub)
    steps = min(max(4, _cdiv(total_bytes, target_block_bytes)), max_steps)
    if steps > 1 and steps % 2 == 1 and steps + 1 <= max_steps:
        steps += 1
    tr = _round_up(_cdiv(R_pad, steps), sub)
    Rp = _round_up(R_pad, tr)
    steps = Rp // tr
    return C, Fp, rows_per_sample, R, Rp, tr, steps


def drop_path_pallas(x, drop_prob=0.0, *, training=False, key=None,
                     min_pallas_bytes=256 * 1024, donate=False):
    """Pallas forward of DropPath (stochastic depth), per-sample."""
    if drop_prob is None:
        drop_prob = 0.0
    if drop_prob == 0.0 or not training:
        # Matches the PyTorch module: identity when not dropping.
        return x
    if key is None:
        raise ValueError("drop_path_pallas needs a PRNG key when training.")

    keep_prob = 1.0 - float(drop_prob)
    B = x.shape[0]
    F = int(np.prod(x.shape[1:]))
    itemsize = x.dtype.itemsize

    # Per-sample binary mask, floor(keep_prob + U[0,1)) exactly like torch.
    # TODO(synk): fold the mask RNG into the kernel via pltpu.prng_random_bits
    # once exact parity with the jax.random-based reference is not required.
    rand = jax.random.uniform(key, (B,), dtype=jnp.float32)
    scale = (jnp.floor(keep_prob + rand) / keep_prob).astype(x.dtype)  # (B,)

    # Tiny tensors: kernel launch + reshapes dominate; XLA fuses the broadcast
    # multiply just as well, so bypass Pallas entirely.
    if B * F * itemsize < min_pallas_bytes:
        return x * scale.reshape((B,) + (1,) * (x.ndim - 1))

    C, Fp, rows_per_sample, R, Rp, tr, steps = _plan_layout(B, F, itemsize)

    # Sublane/lane-dense view: (Rp, C) with full (8,128)-tile rows; per-block
    # VMEM never scales with B.
    x2 = x.reshape(B, F)
    if Fp != F:
        # Ragged feature axis: pad to a multiple of C instead of one giant
        # masked block (keeps unmasked full-width stores + bounded tiles).
        x2 = jnp.pad(x2, ((0, 0), (0, Fp - F)))
    x2 = x2.reshape(R, C)
    if Rp != R:
        x2 = jnp.pad(x2, ((0, Rp - R), (0, 0)))

    row_scale = jnp.repeat(scale, rows_per_sample)            # (R,)
    if Rp != R:
        row_scale = jnp.pad(row_scale, (0, Rp - R))            # pad rows discarded
    row_scale = row_scale.reshape(Rp, 1)

    out = pl.pallas_call(
        _drop_path_kernel,
        out_shape=jax.ShapeDtypeStruct((Rp, C), x.dtype),
        grid_spec=pl.GridSpec(
            grid=(steps,),
            in_specs=[
                pl.BlockSpec((tr, C), lambda i: (i, 0)),
                pl.BlockSpec((tr, 1), lambda i: (i, 0)),
            ],
            out_specs=pl.BlockSpec((tr, C), lambda i: (i, 0)),
        ),
        compiler_params=pltpu.CompilerParams(
            dimension_semantics=("parallel",)),
        # Optional: reuse x2's HBM buffer when the caller no longer needs x.
        input_output_aliases={0: 0} if donate else {},
    )(x2, row_scale)

    out = out[:R].reshape(B, Fp)
    if Fp != F:
        out = out[:, :F]
    return out.reshape(x.shape)


def drop_path_reference(x, drop_prob=0.0, *, training=False, key=None):
    """Pure-JAX reference of the PyTorch drop_path forward."""
    if drop_prob is None or drop_prob == 0.0 or not training:
        return x
    keep_prob = 1.0 - float(drop_prob)
    B = x.shape[0]
    rand = jax.random.uniform(key, (B,), dtype=jnp.float32)
    mask = jnp.floor(keep_prob + rand)
    bshape = (B,) + (1,) * (x.ndim - 1)
    return x * (mask / keep_prob).astype(x.dtype).reshape(bshape)


if __name__ == "__main__":
    drop_prob = 0.25
    k1, k2, k3, kd = jax.random.split(jax.random.PRNGKey(0), 4)

    # 1) Tiny RIN token tensor (2, 8, 32): takes the plain-JAX bypass
    #    (launch overhead would dominate) but must still match the reference.
    x_small = jax.random.normal(k1, (2, 8, 32), dtype=jnp.float32)
    out = jax.block_until_ready(
        drop_path_pallas(x_small, drop_prob, training=True, key=kd))
    ref = drop_path_reference(x_small, drop_prob, training=True, key=kd)
    np.testing.assert_allclose(np.asarray(out), np.asarray(ref),
                               atol=1e-6, rtol=1e-6)

    # 2) Ragged small tensor forced through the kernel: exercises the
    #    feature- and row-padding path (F=672 -> C=768, 2 rows -> 8 rows).
    x_rag = jax.random.normal(k2, (2, 7, 96), dtype=jnp.float32)
    out = jax.block_until_ready(
        drop_path_pallas(x_rag, drop_prob, training=True, key=kd,
                         min_pallas_bytes=0))
    ref = drop_path_reference(x_rag, drop_prob, training=True, key=kd)
    np.testing.assert_allclose(np.asarray(out), np.asarray(ref),
                               atol=1e-6, rtol=1e-6)

    # 3) Moderate activation (4, 256, 1024) f32 = 4 MiB: multi-step parallel
    #    grid (4 steps of (128, 2048) blocks), with the mask RNG fused into
    #    the same jit as the pallas_call.
    x_big = jax.random.normal(k3, (4, 256, 1024), dtype=jnp.float32)
    fn = jax.jit(functools.partial(drop_path_pallas, drop_prob=drop_prob,
                                   training=True))
    out = jax.block_until_ready(fn(x_big, key=kd))
    ref = drop_path_reference(x_big, drop_prob, training=True, key=kd)
    np.testing.assert_allclose(np.asarray(out), np.asarray(ref),
                               atol=1e-6, rtol=1e-6)

    # 4) Eval / drop_prob == 0 path: exact identity, like the PyTorch module.
    out_eval = drop_path_pallas(x_small, 0.0, training=False)
    np.testing.assert_allclose(np.asarray(out_eval), np.asarray(x_small),
                               atol=0.0, rtol=0.0)

    print("KERNEL_OK")
</pallas_src>

<mosaic_0001>
module attributes {stable_mosaic.version = 11 : i64} {
  func.func @_drop_path_kernel(%arg0: i32, %arg1: memref<8x768xf32, #tpu.memory_space<vmem>>, %arg2: memref<8x1xf32, #tpu.memory_space<vmem>>, %arg3: memref<8x768xf32, #tpu.memory_space<vmem>>) attributes {dimension_semantics = [#tpu.dimension_semantics<parallel>], iteration_bounds = array<i64: 1>, scalar_prefetch = 0 : i64, scratch_operands = 0 : i64, tpu.core_type = #tpu.core_type<tc>, window_params = [{transform_indices = @transform_0, window_bounds = array<i64: 8, 768>}, {transform_indices = @transform_1, window_bounds = array<i64: 8, 1>}, {transform_indices = @transform_2, window_bounds = array<i64: 8, 768>}]} {
    %c0 = arith.constant 0 : index
    %c0_0 = arith.constant 0 : index
    %0 = vector.load %arg1[%c0, %c0_0] : memref<8x768xf32, #tpu.memory_space<vmem>>, vector<8x768xf32>
    %c0_1 = arith.constant 0 : index
    %c0_2 = arith.constant 0 : index
    %1 = vector.load %arg2[%c0_1, %c0_2] : memref<8x1xf32, #tpu.memory_space<vmem>>, vector<8x1xf32>
    %2 = vector.broadcast %1 : vector<8x1xf32> to vector<8x768xf32>
    %3 = arith.mulf %0, %2 : vector<8x768xf32>
    %c0_3 = arith.constant 0 : index
    %c0_4 = arith.constant 0 : index
    %4 = vector.load %arg3[%c0_3, %c0_4] : memref<8x768xf32, #tpu.memory_space<vmem>>, vector<8x768xf32>
    tpu.vector_store %arg3[%c0_3, %c0_4], %3 {strides = array<i32>} : memref<8x768xf32, #tpu.memory_space<vmem>>, vector<8x768xf32>,
    return
  }
  func.func @transform_0(%arg0: i32) -> (i32, i32) {
    %c0_i32 = arith.constant 0 : i32
    %c0_i32_0 = arith.constant 0 : i32
    return %arg0, %c0_i32 : i32, i32
  }
  func.func @transform_1(%arg0: i32) -> (i32, i32) {
    %c0_i32 = arith.constant 0 : i32
    %c0_i32_0 = arith.constant 0 : i32
    return %arg0, %c0_i32 : i32, i32
  }
  func.func @transform_2(%arg0: i32) -> (i32, i32) {
    %c0_i32 = arith.constant 0 : i32
    %c0_i32_0 = arith.constant 0 : i32
    return %arg0, %c0_i32 : i32, i32
  }
}

</mosaic_0001>

<llo_original>
// kernel: tpu_custom_call.1
$region0: #{tpu_custom_call.1}
  #allocation0 [shape = 'u32[]', space=smem, size = 0x4, offset = 0x4, fixed_abs, tag = 'smem constant byte address 0x4 - core index']
  #allocation1 [shape = 'u32[144,128]{1,0:T(1,128)}', space=vmem, size = 0x12000, scoped, tag = 'internal scratch']
  %s0 = inlined_call_operand.hbm [shape: f32[8,768], index: 0, kind: input, shape index: {}]
  %s1 = inlined_call_operand.vmem [shape: f32[8,1], index: 1, kind: input, shape index: {}]
  %s2 = inlined_call_operand.hbm [shape: f32[8,768], index: 2, kind: output, shape index: {}]
  %s3 = sld [smem:[#allocation0]]
  $region22: #{tpu_custom_call.1} parent=0
    _
  %s5 = ssub.s32 1, %s3
  %s6 = scalar_select 0, %s5, %s3
  $region1: #{tpu_custom_call.1} parent=0
    #allocation2 [shape = 'u8[24576]{0}', space=vmem, size = 0x6000, scoped, tag = 'input window, operand 0, single buffered']
    #allocation3 [shape = 's32[1]{0}', space=sflag, size = 0x4, scoped, tag = 'scoped memory for tpu_custom_call.1']
    #allocation4 [shape = 's32[1]{0}', space=sflag, size = 0x4, scoped, tag = 'scoped memory for tpu_custom_call.1']
    #allocation5 [shape = 'u8[24576]{0}', space=vmem, size = 0x6000, scoped, tag = 'output window, operand 0, single buffered']
    %7 = vsyncpa [#allocation3], 0
    %8 = vsyncpa [#allocation4], 0
    // Predicated region
    $region2: #{tpu_custom_call.1} parent=1 // pred_check
      _
    $region3: #{tpu_custom_call.1} parent=1 // pred_check_branch
      %10 = sbr.rel (0) target = $region5
    $region4: #{tpu_custom_call.1} parent=1 // pred_region
      %s12 = ssub.s32 768, 768
      %13 = vsyncadd [#allocation3], %s12
      %s15 = sshll.u32 [#allocation2], 4
      %s16 = int_to_ptr.vmem [resolvable:$true] %s15
      %18 = dma.hbm_to_vmem [thread:$0]  %s0, 768, %s16, [#allocation3]
    $region5: #{tpu_custom_call.1} parent=1 // pred_fallthru
      _
    // Predicated region
    $region6: #{tpu_custom_call.1} parent=1 // pred_check
      _
    $region7: #{tpu_custom_call.1} parent=1 // pred_check_branch
      %20 = sbr.rel (0) target = $region9
    $region8: #{tpu_custom_call.1} parent=1 // pred_region
      _
    $region9: #{tpu_custom_call.1} parent=1 // pred_fallthru
      _
    // Predicated region
    $region10: #{tpu_custom_call.1} parent=1 // pred_check
      _
    $region11: #{tpu_custom_call.1} parent=1 // pred_check_branch
      %22 = sbr.rel (0) target = $region13
    $region12: #{tpu_custom_call.1} parent=1 // pred_region
      %23 = dma.done [#allocation3], 768
    $region13: #{tpu_custom_call.1} parent=1 // pred_fallthru
      _
    %v24 = vld [vmem:[#allocation2] sm:$0xff]
    %v25 = vld [vmem:[#allocation2 + $0x8] sm:$0xff]
    %v26 = vld [vmem:[#allocation2 + $0x10] sm:$0xff]
    %v27 = vld [vmem:[#allocation2 + $0x18] sm:$0xff]
    %v28 = vld [vmem:[#allocation2 + $0x20] sm:$0xff]
    %v29 = vld [vmem:[#allocation2 + $0x28] sm:$0xff]
    %v30 = vld [vmem:[%s1] sm:$0xff]
    %32 = vset.pattern.permute.xlu0 0
    %33 = vperm.xlu0 %32, %v30
    %v34 = vpop.permute.xlu0 %33
    %v36 = vmul.f32 %v24, %v34
    %v37 = vmul.f32 %v25, %v34
    %v38 = vmul.f32 %v26, %v34
    %v39 = vmul.f32 %v27, %v34
    %v40 = vmul.f32 %v28, %v34
    %v41 = vmul.f32 %v29, %v34
    %42 = vst [vmem:[#allocation5] sm:$0xff] %v36
    %43 = vst [vmem:[#allocation5 + $0x8] sm:$0xff] %v37
    %44 = vst [vmem:[#allocation5 + $0x10] sm:$0xff] %v38
    %45 = vst [vmem:[#allocation5 + $0x18] sm:$0xff] %v39
    %46 = vst [vmem:[#allocation5 + $0x20] sm:$0xff] %v40
    %47 = vst [vmem:[#allocation5 + $0x28] sm:$0xff] %v41
    // Predicated region
    $region14: #{tpu_custom_call.1} parent=1 // pred_check
      _
    $region15: #{tpu_custom_call.1} parent=1 // pred_check_branch
      %49 = sbr.rel (0) target = $region17
    $region16: #{tpu_custom_call.1} parent=1 // pred_region
      %s51 = ssub.s32 768, 768
      %52 = vsyncadd [#allocation4], %s51
      %s54 = sshll.u32 [#allocation5], 4
      %s55 = int_to_ptr.vmem [resolvable:$true] %s54
      %57 = dma.vmem_to_hbm [thread:$0]  %s55, 768, %s2, [#allocation4]
    $region17: #{tpu_custom_call.1} parent=1 // pred_fallthru
      _
    // Predicated region
    $region18: #{tpu_custom_call.1} parent=1 // pred_check
      _
    $region19: #{tpu_custom_call.1} parent=1 // pred_check_branch
      %59 = sbr.rel (0) target = $region21
    $region20: #{tpu_custom_call.1} parent=1 // pred_region
      %60 = dma.done [#allocation4], 768
    $region21: #{tpu_custom_call.1} parent=1 // pred_fallthru
      _
    %61 = vsyncpa [#allocation3], 1
    %62 = vsyncpa [#allocation4], 1

</llo_original>
